<compile_context>
chip_gen: v6e
topology: v6e:2x2x1
jax: 0.10.0
libtpu: 0.0.40
codegen_flags: <defaults>
</compile_context>

<pallas_src>
import functools

import jax
import jax.numpy as jnp
from jax import lax
from jax.experimental import pallas as pl
from jax.experimental.pallas import tpu as pltpu


def _maxpool_flat_kernel(x_ref, o_ref, *, H, W, use_roll):
    """x_ref / o_ref are (T, H*W); lane axis is the flattened spatial extent."""
    x = x_ref[...]                                     # whole block, one load
    HW = H * W

    # Single (1, HW) iota row; masks broadcast across the sublane (T) axis.
    lane = lax.broadcasted_iota(jnp.int32, (1, HW), 1)

    # ---- max over the W window (right neighbour, replicate at right edge) ----
    if W > 1:
        last_col = (lane % W) == (W - 1)
        if use_roll:
            # out[j] = x[(j+1) % HW]; wrapped lane lands on a masked position.
            right = pltpu.roll(x, shift=HW - 1, axis=1)
        else:
            right = jnp.concatenate([x[:, 1:], x[:, :1]], axis=1)
        m = jnp.maximum(x, jnp.where(last_col, x, right))
    else:
        m = x

    # ---- max over the H window (down neighbour, replicate at bottom edge) ----
    if H > 1:
        last_row = lane >= (H - 1) * W
        if use_roll:
            # out[j] = m[(j+W) % HW]; wrapped lanes land on masked positions.
            down = pltpu.roll(m, shift=HW - W, axis=1)
        else:
            down = jnp.concatenate([m[:, W:], m[:, :W]], axis=1)
        out = jnp.maximum(m, jnp.where(last_row, m, down))
    else:
        out = m

    o_ref[...] = out                                   # single lane-dense store


def _vmem_capacity_bytes():
    """Physical VMEM per TensorCore; conservative fallback if the query fails."""
    try:
        return int(pltpu.get_tpu_info().vmem_capacity_bytes)
    except Exception:
        return 64 << 20


def _choose_tile_and_limit(n_rows, row_bytes, itemsize):
    """Tile along the plane (B*C) axis + a VMEM limit, per TPU generation."""
    # dtype-aware sublane multiple: f32 -> 8, bf16/f16 -> 16, int8/fp8 -> 32
    sub = {4: 8, 2: 16, 1: 32}.get(itemsize, 8)
    cap = _vmem_capacity_bytes()
    if cap >= 96 << 20:                    # v5e / v6e: 128 MiB physical per TC
        budget, vmem_limit = 4 << 20, 64 << 20
    else:                                  # v7x: 64 MiB per TensorCore
        budget, vmem_limit = 2 << 20, 40 << 20

    if n_rows <= sub:
        return n_rows, vmem_limit          # full-extent block (always legal)

    # Largest sublane-aligned tile whose block stays within the budget.
    tile = max(sub, (budget // max(row_bytes, 1)) // sub * sub)
    # Keep >= 2 grid steps so v7x can shard the parallel axis over its 2 TCs.
    half = -(-n_rows // 2)                 # cdiv(n_rows, 2)
    half = -(-half // sub) * sub           # round up to the sublane multiple
    tile = min(tile, half, n_rows)
    return tile, vmem_limit


def max_pool_padded_stride1(x):
    """Pallas TPU implementation of MaxPoolPaddedStride1.forward (NCHW input)."""
    B, C, H, W = x.shape
    BC, HW = B * C, H * W
    itemsize = jnp.dtype(x.dtype).itemsize

    tile, vmem_limit = _choose_tile_and_limit(BC, HW * itemsize, itemsize)
    grid = (pl.cdiv(BC, tile),)            # ragged last block is fine: rows are
    #                                        independent, Pallas clips edge DMAs
    use_roll = (HW % 128 == 0)             # XLU lane rotation on aligned lanes

    xin = x.reshape(BC, HW)                # free reshape; lane axis = H*W
    kernel = functools.partial(_maxpool_flat_kernel, H=H, W=W, use_roll=use_roll)
    spec = pl.BlockSpec((tile, HW), lambda i: (i, 0))

    out = pl.pallas_call(
        kernel,
        out_shape=jax.ShapeDtypeStruct((BC, HW), x.dtype),
        grid_spec=pltpu.PrefetchScalarGridSpec(
            num_scalar_prefetch=0,
            grid=grid,
            in_specs=[spec],
            out_specs=spec,
        ),
        compiler_params=pltpu.CompilerParams(
            dimension_semantics=("parallel",),
            vmem_limit_bytes=vmem_limit,
        ),
        cost_estimate=pl.CostEstimate(
            flops=3 * BC * HW,
            transcendentals=0,
            bytes_accessed=2 * BC * HW * itemsize,
        ),
    )(xin)

    return out.reshape(B, C, H, W)


def max_pool_reference(x):
    """Pure-JAX replica of the PyTorch module (correctness check)."""
    xp = jnp.pad(x, ((0, 0), (0, 0), (0, 1), (0, 1)), mode="edge")
    return jnp.maximum(
        jnp.maximum(xp[:, :, :-1, :-1], xp[:, :, :-1, 1:]),
        jnp.maximum(xp[:, :, 1:, :-1], xp[:, :, 1:, 1:]),
    )


if __name__ == "__main__":
    key = jax.random.PRNGKey(0)

    # Primary small shape consistent with the module.
    B, C, H, W = 2, 4, 16, 16
    x = jax.random.normal(key, (B, C, H, W), dtype=jnp.float32)
    out = jax.block_until_ready(max_pool_padded_stride1(x))
    ref = max_pool_reference(x)
    assert out.shape == (B, C, H, W)
    assert jnp.allclose(out, ref, atol=1e-6, rtol=1e-6), "mismatch vs reference"

    # Second check: plane count that forces a multi-step cdiv grid with a
    # ragged last block (BC=10 -> tile=8, grid=(2,)).
    x2 = jax.random.normal(jax.random.PRNGKey(0), (2, 5, 16, 16), dtype=jnp.float32)
    out2 = jax.block_until_ready(max_pool_padded_stride1(x2))
    ref2 = max_pool_reference(x2)
    assert jnp.allclose(out2, ref2, atol=1e-6, rtol=1e-6), "mismatch (ragged grid)"

    print("KERNEL_OK")
</pallas_src>

<mosaic_0001>
module attributes {stable_mosaic.version = 11 : i64} {
  func.func @_maxpool_flat_kernel(%arg0: i32, %arg1: memref<8x256xf32, #tpu.memory_space<vmem>>, %arg2: memref<8x256xf32, #tpu.memory_space<vmem>>) attributes {dimension_semantics = [#tpu.dimension_semantics<parallel>], iteration_bounds = array<i64: 1>, scalar_prefetch = 0 : i64, scratch_operands = 0 : i64, tpu.core_type = #tpu.core_type<tc>, window_params = [{transform_indices = @transform_0, window_bounds = array<i64: 8, 256>}, {transform_indices = @transform_1, window_bounds = array<i64: 8, 256>}]} {
    %c0 = arith.constant 0 : index
    %c0_0 = arith.constant 0 : index
    %0 = vector.load %arg1[%c0, %c0_0] : memref<8x256xf32, #tpu.memory_space<vmem>>, vector<8x256xf32>
    %1 = tpu.iota {dimensions = array<i32: 1>} : vector<1x256xi32>
    %c16_i32 = arith.constant 16 : i32
    %c0_i32 = arith.constant 0 : i32
    %2 = arith.cmpi eq, %c16_i32, %c0_i32 : i32
    %c1_i32 = arith.constant 1 : i32
    %3 = arith.select %2, %c1_i32, %c16_i32 : i32
    %4 = vector.broadcast %3 : i32 to vector<1x256xi32>
    %5 = arith.remsi %1, %4 : vector<1x256xi32>
    %c0_i32_1 = arith.constant 0 : i32
    %6 = vector.broadcast %c0_i32_1 : i32 to vector<1x256xi32>
    %7 = arith.cmpi ne, %5, %6 : vector<1x256xi32>
    %c0_i32_2 = arith.constant 0 : i32
    %8 = vector.broadcast %c0_i32_2 : i32 to vector<1x256xi32>
    %9 = arith.cmpi slt, %5, %8 : vector<1x256xi32>
    %c0_i32_3 = arith.constant 0 : i32
    %10 = arith.cmpi slt, %3, %c0_i32_3 : i32
    %11 = vector.broadcast %10 : i1 to vector<1x256xi1>
    %12 = vector.broadcast %11 : vector<1x256xi1> to vector<1x256xi1>
    %13 = arith.xori %9, %12 : vector<1x256xi1>
    %14 = arith.andi %13, %7 : vector<1x256xi1>
    %15 = vector.broadcast %3 : i32 to vector<1x256xi32>
    %16 = arith.addi %5, %15 : vector<1x256xi32>
    %17 = arith.select %14, %16, %5 : vector<1x256xi1>, vector<1x256xi32>
    %c15_i32 = arith.constant 15 : i32
    %18 = vector.broadcast %c15_i32 : i32 to vector<1x256xi32>
    %19 = arith.cmpi eq, %17, %18 : vector<1x256xi32>
    %c255_i32 = arith.constant 255 : i32
    %20 = tpu.dynamic_rotate %0 by %c255_i32 dim 1 : vector<8x256xf32>, i32 -> vector<8x256xf32>
    %21 = vector.shape_cast %19 : vector<1x256xi1> to vector<1x256xi1>
    %22 = vector.broadcast %21 : vector<1x256xi1> to vector<8x256xi1>
    %23 = arith.select %22, %0, %20 : vector<8x256xi1>, vector<8x256xf32>
    %24 = arith.maximumf %0, %23 : vector<8x256xf32>
    %c240_i32 = arith.constant 240 : i32
    %25 = vector.broadcast %c240_i32 : i32 to vector<1x256xi32>
    %26 = arith.cmpi sge, %1, %25 : vector<1x256xi32>
    %c240_i32_4 = arith.constant 240 : i32
    %27 = tpu.dynamic_rotate %24 by %c240_i32_4 dim 1 : vector<8x256xf32>, i32 -> vector<8x256xf32>
    %28 = vector.shape_cast %26 : vector<1x256xi1> to vector<1x256xi1>
    %29 = vector.broadcast %28 : vector<1x256xi1> to vector<8x256xi1>
    %30 = arith.select %29, %24, %27 : vector<8x256xi1>, vector<8x256xf32>
    %31 = arith.maximumf %24, %30 : vector<8x256xf32>
    %c0_5 = arith.constant 0 : index
    %c0_6 = arith.constant 0 : index
    %32 = vector.load %arg2[%c0_5, %c0_6] : memref<8x256xf32, #tpu.memory_space<vmem>>, vector<8x256xf32>
    tpu.vector_store %arg2[%c0_5, %c0_6], %31 {strides = array<i32>} : memref<8x256xf32, #tpu.memory_space<vmem>>, vector<8x256xf32>,
    return
  }
  func.func @transform_0(%arg0: i32) -> (i32, i32) {
    %c0_i32 = arith.constant 0 : i32
    %c0_i32_0 = arith.constant 0 : i32
    return %arg0, %c0_i32 : i32, i32
  }
  func.func @transform_1(%arg0: i32) -> (i32, i32) {
    %c0_i32 = arith.constant 0 : i32
    %c0_i32_0 = arith.constant 0 : i32
    return %arg0, %c0_i32 : i32, i32
  }
}

</mosaic_0001>

<llo_original>
// kernel: tpu_custom_call.1
$region0: #{tpu_custom_call.1}
  #allocation0 [shape = 'u32[]', space=smem, size = 0x4, offset = 0x4, fixed_abs, tag = 'smem constant byte address 0x4 - core index']
  #allocation1 [shape = 'u32[144,128]{1,0:T(1,128)}', space=vmem, size = 0x12000, scoped, tag = 'internal scratch']
  %s0 = inlined_call_operand.hbm [shape: f32[8,256], index: 0, kind: input, shape index: {}]
  %s1 = inlined_call_operand.hbm [shape: f32[8,256], index: 1, kind: output, shape index: {}]
  %s2 = sld [smem:[#allocation0]]
  $region18: #{tpu_custom_call.1} parent=0
    _
  %s4 = ssub.s32 1, %s2
  %s5 = scalar_select 0, %s4, %s2
  $region1: #{tpu_custom_call.1} parent=0
    #allocation2 [shape = 'u8[8192]{0}', space=vmem, size = 0x2000, scoped, tag = 'input window, operand 0, single buffered']
    #allocation3 [shape = 's32[1]{0}', space=sflag, size = 0x4, scoped, tag = 'scoped memory for tpu_custom_call.1']
    #allocation4 [shape = 's32[1]{0}', space=sflag, size = 0x4, scoped, tag = 'scoped memory for tpu_custom_call.1']
    #allocation5 [shape = 'u8[8192]{0}', space=vmem, size = 0x2000, scoped, tag = 'output window, operand 0, single buffered']
    %6 = vsyncpa [#allocation3], 0
    %7 = vsyncpa [#allocation4], 0
    // Predicated region
    $region2: #{tpu_custom_call.1} parent=1 // pred_check
      _
    $region3: #{tpu_custom_call.1} parent=1 // pred_check_branch
      %9 = sbr.rel (0) target = $region5
    $region4: #{tpu_custom_call.1} parent=1 // pred_region
      %s11 = ssub.s32 256, 256
      %12 = vsyncadd [#allocation3], %s11
      %s14 = sshll.u32 [#allocation2], 4
      %s15 = int_to_ptr.vmem [resolvable:$true] %s14
      %17 = dma.hbm_to_vmem [thread:$0]  %s0, 256, %s15, [#allocation3]
    $region5: #{tpu_custom_call.1} parent=1 // pred_fallthru
      _
    // Predicated region
    $region6: #{tpu_custom_call.1} parent=1 // pred_check
      _
    $region7: #{tpu_custom_call.1} parent=1 // pred_check_branch
      %19 = sbr.rel (0) target = $region9
    $region8: #{tpu_custom_call.1} parent=1 // pred_region
      %20 = dma.done [#allocation3], 256
    $region9: #{tpu_custom_call.1} parent=1 // pred_fallthru
      _
    %v21 = vld [vmem:[#allocation2] sm:$0xff]
    %v22 = vld [vmem:[#allocation2 + $0x8] sm:$0xff]
    %v23 = vlaneseq
    %v24 = vand.u32 %v23, 127
    %v25 = vadd.s32 %v24, 128
    %vm26 = vcmp.lt.s32.totalorder %v24, 0
    %v27 = vsub.s32 0, %v24
    %v28 = vsel %vm26, %v27, %v24
    %v29 = vshrl.u32 %v28, 4
    %v30 = vand.u32 %v28, 15
    %v31 = vsub.s32 0, %v30
    %v32 = vsel %vm26, %v31, %v30
    %vm33 = vcmp.lt.s32.totalorder %v25, 0
    %v34 = vsub.s32 0, %v25
    %v35 = vsel %vm33, %v34, %v25
    %v36 = vshrl.u32 %v35, 4
    %v37 = vand.u32 %v35, 15
    %v38 = vsub.s32 0, %v37
    %v39 = vsel %vm33, %v38, %v37
    %vm40 = vcmp.ne.s32.totalorder %v32, 0
    %vm41 = vcmp.ne.s32.totalorder %v39, 0
    %vm42 = vcmp.lt.s32.totalorder %v32, 0
    %vm43 = vcmp.lt.s32.totalorder %v39, 0
    %vm44 = vmand %vm42, %vm40
    %vm45 = vmand %vm43, %vm41
    %v46 = vadd.s32 %v32, 16
    %v47 = vadd.s32 %v39, 16
    %v48 = vsel %vm44, %v46, %v32
    %v49 = vsel %vm45, %v47, %v39
    %vm50 = vcmp.eq.s32.totalorder %v48, 15
    %vm51 = vcmp.eq.s32.totalorder %v49, 15
    %52 = vrot.lane.b32.xlu0 %v21, 127
    %v53 = vpop.permute.xlu0 %52
    %54 = vrot.lane.b32.xlu0 %v22, 127
    %v55 = vpop.permute.xlu0 %54
    %vm56 = vcmp.lt.s32.totalorder %v24, 127
    %v57 = vsel %vm56, %v53, %v55
    %v58 = vsel %vm56, %v55, %v53
    %v59 = vsel %vm50, 1, 0
    %v60 = vsel %vm51, 1, 0
    %vm61 = vcmp.eq.s32.totalorder %v59, 1
    %vm62 = vcmp.eq.s32.totalorder %v60, 1
    %v63 = vsel %vm61, %v21, %v57
    %v64 = vsel %vm62, %v22, %v58
    %v65 = vmax.f32 %v21, %v63
    %v66 = vmax.f32 %v22, %v64
    %vm67 = vcmp.ge.s32.totalorder %v24, 240
    %vm68 = vcmp.ge.s32.totalorder %v25, 240
    %69 = vrot.lane.b32.xlu0 %v65, 112
    %v70 = vpop.permute.xlu0 %69
    %71 = vrot.lane.b32.xlu0 %v66, 112
    %v72 = vpop.permute.xlu0 %71
    %vm73 = vcmp.lt.s32.totalorder %v24, 112
    %v74 = vsel %vm73, %v70, %v72
    %v75 = vsel %vm73, %v72, %v70
    %v76 = vsel %vm67, 1, 0
    %v77 = vsel %vm68, 1, 0
    %vm78 = vcmp.eq.s32.totalorder %v76, 1
    %vm79 = vcmp.eq.s32.totalorder %v77, 1
    %v80 = vsel %vm78, %v65, %v74
    %v81 = vsel %vm79, %v66, %v75
    %v82 = vmax.f32 %v65, %v80
    %v83 = vmax.f32 %v66, %v81
    %84 = vst [vmem:[#allocation5] sm:$0xff] %v82
    %85 = vst [vmem:[#allocation5 + $0x8] sm:$0xff] %v83
    // Predicated region
    $region10: #{tpu_custom_call.1} parent=1 // pred_check
      _
    $region11: #{tpu_custom_call.1} parent=1 // pred_check_branch
      %87 = sbr.rel (0) target = $region13
    $region12: #{tpu_custom_call.1} parent=1 // pred_region
      %s89 = ssub.s32 256, 256
      %90 = vsyncadd [#allocation4], %s89
      %s92 = sshll.u32 [#allocation5], 4
      %s93 = int_to_ptr.vmem [resolvable:$true] %s92
      %95 = dma.vmem_to_hbm [thread:$0]  %s93, 256, %s1, [#allocation4]
    $region13: #{tpu_custom_call.1} parent=1 // pred_fallthru
      _
    // Predicated region
    $region14: #{tpu_custom_call.1} parent=1 // pred_check
      _
    $region15: #{tpu_custom_call.1} parent=1 // pred_check_branch
      %97 = sbr.rel (0) target = $region17
    $region16: #{tpu_custom_call.1} parent=1 // pred_region
      %98 = dma.done [#allocation4], 256
    $region17: #{tpu_custom_call.1} parent=1 // pred_fallthru
      _
    %99 = vsyncpa [#allocation3], 1
    %100 = vsyncpa [#allocation4], 1

</llo_original>
